<compile_context>
chip_gen: v5e
topology: v5e:2x2
jax: 0.10.0
libtpu: 0.0.40
codegen_flags: <defaults>
</compile_context>

<pallas_src>
import functools

import jax
import jax.numpy as jnp
from jax.experimental import pallas as pl
from jax.experimental.pallas import tpu as pltpu


def _round_up(x, m):
    return (x + m - 1) // m * m


def _round_down_min(x, m):
    return max(m, (x // m) * m)


def _vmem_capacity_bytes():
    """Physical per-core VMEM; falls back to the smallest generation (v7x, 64 MiB)."""
    try:
        cap = int(pltpu.get_tpu_info().vmem_capacity_bytes)
        if cap > 0:
            return cap
    except Exception:
        pass
    return 64 * 1024 * 1024


def _ce_ls_kernel(x_ref, t_ref, loss_ref, *, epsilon, num_classes, n_total, tile_n):
    """Label-smoothed CE per-row loss for one (tile_n, C) logits tile.

    row_loss = lse - sum_j w_j * shifted_j, with w_j = eps/C + (1-eps)*[j==target],
    which equals (1-eps)*(lse - shifted[target]) + (eps/C)*(C*lse - sum_j shifted_j).
    """
    step = pl.program_id(0)

    x = x_ref[...].astype(jnp.float32)                                 # (tile_n, C)
    t = t_ref[...]                                                     # (tile_n, 1) int32

    # Numerically stable logsumexp along the class (lane) axis.
    m = jnp.max(x, axis=-1, keepdims=True)
    shifted = x - m
    lse = jnp.log(jnp.sum(jnp.exp(shifted), axis=-1, keepdims=True))   # (tile_n, 1)

    # Single fused weighted class-axis reduction (replaces the separate
    # target-gather + plain row-sum -> one fewer XLU reduction per tile).
    col = jax.lax.broadcasted_iota(jnp.int32, shifted.shape, 1)
    base = jnp.float32(epsilon / num_classes)
    w = jnp.where(col == t, jnp.float32(1.0 - epsilon) + base, base)
    row_loss = lse - jnp.sum(w * shifted, axis=-1, keepdims=True)      # (tile_n, 1)
    # TODO(synk): on v7x the two class-axis sums could be pushed to the idle MXU
    # (dot against a ones/weight operand) to relieve the XLU slot.

    # Zero rows past the true batch size (padded last tile).  A select is enough:
    # NaN/Inf in padded input rows cannot leak into valid rows.
    row = jax.lax.broadcasted_iota(jnp.int32, (tile_n, 1), 0) + step * tile_n
    loss_ref[...] = jnp.where(row < n_total, row_loss, 0.0)


def cross_entropy_label_smooth(inputs, targets, *, num_classes, epsilon, tile_n=None):
    """inputs: (N, C) float logits (f32 or bf16), targets: (N,) int ids -> scalar f32 loss."""
    n, c = inputs.shape
    assert c == num_classes
    targets_2d = targets.astype(jnp.int32).reshape(n, 1)
    itemsize = jnp.dtype(inputs.dtype).itemsize

    # ---- tile selection: largest sublane-aligned row tile that fits VMEM ----
    vmem_cap = _vmem_capacity_bytes()
    # Per row: double-buffered logits tile + ~3 full-width f32 temporaries
    # (x_f32 / shifted / weighted) + labels + per-row loss (double-buffered).
    bytes_per_row = c * (2 * itemsize + 3 * 4) + 4 * 4
    budget = int(vmem_cap * 0.55)                    # leave pipeline/compiler headroom
    fit_tile = _round_down_min(budget // max(bytes_per_row, 1), 8)
    if tile_n is None:
        # Big tiles on v5e/v6e (128 MiB VMEM) to amortize per-step overhead;
        # conservative default on v7x (64 MiB).
        tile_n = 2048 if vmem_cap >= 96 * 1024 * 1024 else 512
    tile_n = _round_down_min(int(tile_n), 8)         # (8,128) BlockSpec constraint
    tile_n = max(8, min(tile_n, fit_tile, _round_up(n, 8)))
    # TODO(synk): for very large C (>=16K) add a class-axis grid dim with an online
    # (flash-style) logsumexp so VMEM per step no longer scales with C.

    num_tiles = pl.cdiv(n, tile_n)
    n_pad = num_tiles * tile_n

    est_vmem = 2 * tile_n * c * itemsize + 3 * tile_n * c * 4 + 4 * tile_n * 4
    vmem_limit = int(min(vmem_cap * 7 // 8,          # never exceed physical (<=56 MiB on v7x)
                         max(16 * 1024 * 1024, est_vmem + 4 * 1024 * 1024)))

    kernel = functools.partial(
        _ce_ls_kernel,
        epsilon=float(epsilon),
        num_classes=int(num_classes),
        n_total=int(n),
        tile_n=int(tile_n),
    )

    row_losses = pl.pallas_call(
        kernel,
        out_shape=jax.ShapeDtypeStruct((n_pad, 1), jnp.float32),
        grid=(num_tiles,),
        in_specs=[
            pl.BlockSpec((tile_n, c), lambda i: (i, 0)),   # logits tile (double-buffered)
            pl.BlockSpec((tile_n, 1), lambda i: (i, 0)),   # labels tile
        ],
        out_specs=pl.BlockSpec((tile_n, 1), lambda i: (i, 0)),  # per-row losses
        compiler_params=pltpu.CompilerParams(
            dimension_semantics=("parallel",),             # independent row tiles
            vmem_limit_bytes=vmem_limit,
        ),
        cost_estimate=pl.CostEstimate(
            flops=6 * n * c,
            transcendentals=n * c,
            bytes_accessed=n * c * itemsize + n * 4 + n_pad * 4,
        ),
    )(inputs, targets_2d)

    # Single tree reduction over per-row losses (padded rows are exact zeros),
    # then the batch mean.  Better numerics than a serial running-scalar sum.
    return jnp.sum(row_losses) * jnp.float32(1.0 / n)


def _reference(inputs, targets, num_classes, epsilon):
    log_probs = jax.nn.log_softmax(inputs.astype(jnp.float32), axis=1)
    onehot = jax.nn.one_hot(targets, num_classes, dtype=jnp.float32)
    t = (1.0 - epsilon) * onehot + epsilon / num_classes
    return (-t * log_probs).mean(0).sum()


if __name__ == "__main__":
    epsilon = 0.1
    key = jax.random.PRNGKey(0)
    k1, k2, k3, k4 = jax.random.split(key, 4)

    # Case 1: small single-tile case (original toy shape).
    num_classes1, batch1 = 32, 8
    x1 = jax.random.normal(k1, (batch1, num_classes1), dtype=jnp.float32)
    t1 = jax.random.randint(k2, (batch1,), 0, num_classes1, dtype=jnp.int32)
    loss1 = jax.block_until_ready(
        cross_entropy_label_smooth(x1, t1, num_classes=num_classes1, epsilon=epsilon)
    )
    ref1 = _reference(x1, t1, num_classes1, epsilon)
    assert jnp.allclose(loss1, ref1, rtol=1e-5, atol=1e-5), (loss1, ref1)

    # Case 2: multi-tile grid with a partial last tile and a non-multiple-of-8
    # requested tile (exercises tile rounding, row masking, wrapper reduction).
    num_classes2, batch2 = 160, 13
    x2 = jax.random.normal(k3, (batch2, num_classes2), dtype=jnp.float32)
    t2 = jax.random.randint(k4, (batch2,), 0, num_classes2, dtype=jnp.int32)
    loss2 = jax.block_until_ready(
        cross_entropy_label_smooth(
            x2, t2, num_classes=num_classes2, epsilon=epsilon, tile_n=13
        )
    )
    ref2 = _reference(x2, t2, num_classes2, epsilon)
    assert jnp.allclose(loss2, ref2, rtol=1e-5, atol=1e-5), (loss2, ref2)

    # Case 3: bf16 logits (f32 accumulation inside the kernel).
    x3 = x2.astype(jnp.bfloat16)
    loss3 = jax.block_until_ready(
        cross_entropy_label_smooth(x3, t2, num_classes=num_classes2, epsilon=epsilon)
    )
    ref3 = _reference(x3.astype(jnp.float32), t2, num_classes2, epsilon)
    assert jnp.allclose(loss3, ref3, rtol=2e-2, atol=2e-2), (loss3, ref3)

    print("KERNEL_OK")
</pallas_src>

<mosaic_0001>
module attributes {stable_mosaic.version = 11 : i64} {
  func.func @_ce_ls_kernel(%arg0: i32, %arg1: memref<8x32xf32, #tpu.memory_space<vmem>>, %arg2: memref<8x1xi32, #tpu.memory_space<vmem>>, %arg3: memref<8x1xf32, #tpu.memory_space<vmem>>) attributes {dimension_semantics = [#tpu.dimension_semantics<parallel>], iteration_bounds = array<i64: 1>, scalar_prefetch = 0 : i64, scratch_operands = 0 : i64, tpu.core_type = #tpu.core_type<tc>, window_params = [{transform_indices = @transform_0, window_bounds = array<i64: 8, 32>}, {transform_indices = @transform_1, window_bounds = array<i64: 8, 1>}, {transform_indices = @transform_2, window_bounds = array<i64: 8, 1>}]} {
    %c0 = arith.constant 0 : index
    %c0_0 = arith.constant 0 : index
    %0 = vector.load %arg1[%c0, %c0_0] : memref<8x32xf32, #tpu.memory_space<vmem>>, vector<8x32xf32>
    %c0_1 = arith.constant 0 : index
    %c0_2 = arith.constant 0 : index
    %1 = vector.load %arg2[%c0_1, %c0_2] : memref<8x1xi32, #tpu.memory_space<vmem>>, vector<8x1xi32>
    %cst = arith.constant dense<0xFF800000> : vector<8xf32>
    %2 = vector.multi_reduction <maximumf>, %0, %cst [1] : vector<8x32xf32> to vector<8xf32>
    %3 = vector.shape_cast %2 : vector<8xf32> to vector<8x1xf32>
    %4 = vector.broadcast %3 : vector<8x1xf32> to vector<8x32xf32>
    %5 = arith.subf %0, %4 : vector<8x32xf32>
    %6 = math.exp %5 : vector<8x32xf32>
    %cst_3 = arith.constant dense<0.000000e+00> : vector<8xf32>
    %7 = vector.multi_reduction <add>, %6, %cst_3 [1] : vector<8x32xf32> to vector<8xf32>
    %8 = vector.shape_cast %7 : vector<8xf32> to vector<8x1xf32>
    %9 = math.log %8 : vector<8x1xf32>
    %10 = tpu.iota {dimensions = array<i32: 1>} : vector<8x32xi32>
    %11 = vector.broadcast %1 : vector<8x1xi32> to vector<8x32xi32>
    %12 = arith.cmpi eq, %10, %11 : vector<8x32xi32>
    %cst_4 = arith.constant 0.899999976 : f32
    %cst_5 = arith.constant 3.125000e-03 : f32
    %13 = arith.addf %cst_4, %cst_5 : f32
    %cst_6 = arith.constant 3.125000e-03 : f32
    %14 = vector.broadcast %13 : f32 to vector<8x32xf32>
    %15 = vector.broadcast %cst_6 : f32 to vector<8x32xf32>
    %16 = arith.select %12, %14, %15 : vector<8x32xi1>, vector<8x32xf32>
    %17 = arith.mulf %16, %5 : vector<8x32xf32>
    %cst_7 = arith.constant dense<0.000000e+00> : vector<8xf32>
    %18 = vector.multi_reduction <add>, %17, %cst_7 [1] : vector<8x32xf32> to vector<8xf32>
    %19 = vector.shape_cast %18 : vector<8xf32> to vector<8x1xf32>
    %20 = arith.subf %9, %19 : vector<8x1xf32>
    %21 = tpu.iota {dimensions = array<i32: 0>} : vector<8x1xi32>
    %c8_i32 = arith.constant 8 : i32
    %22 = arith.muli %arg0, %c8_i32 : i32
    %23 = vector.broadcast %22 : i32 to vector<8x1xi32>
    %24 = arith.addi %21, %23 : vector<8x1xi32>
    %c8_i32_8 = arith.constant 8 : i32
    %25 = vector.broadcast %c8_i32_8 : i32 to vector<8x1xi32>
    %26 = arith.cmpi slt, %24, %25 : vector<8x1xi32>
    %cst_9 = arith.constant 0.000000e+00 : f32
    %27 = vector.broadcast %cst_9 : f32 to vector<8x1xf32>
    %28 = arith.select %26, %20, %27 : vector<8x1xi1>, vector<8x1xf32>
    %c0_10 = arith.constant 0 : index
    %c0_11 = arith.constant 0 : index
    %29 = vector.load %arg3[%c0_10, %c0_11] : memref<8x1xf32, #tpu.memory_space<vmem>>, vector<8x1xf32>
    tpu.vector_store %arg3[%c0_10, %c0_11], %28 {strides = array<i32>} : memref<8x1xf32, #tpu.memory_space<vmem>>, vector<8x1xf32>,
    return
  }
  func.func @transform_0(%arg0: i32) -> (i32, i32) {
    %c0_i32 = arith.constant 0 : i32
    %c0_i32_0 = arith.constant 0 : i32
    return %arg0, %c0_i32 : i32, i32
  }
  func.func @transform_1(%arg0: i32) -> (i32, i32) {
    %c0_i32 = arith.constant 0 : i32
    %c0_i32_0 = arith.constant 0 : i32
    return %arg0, %c0_i32 : i32, i32
  }
  func.func @transform_2(%arg0: i32) -> (i32, i32) {
    %c0_i32 = arith.constant 0 : i32
    %c0_i32_0 = arith.constant 0 : i32
    return %arg0, %c0_i32 : i32, i32
  }
}

</mosaic_0001>

<llo_original>
// kernel: tpu_custom_call.1
$region0: #{tpu_custom_call.1}
  #allocation0 [shape = 'u32[]', space=smem, size = 0x4, offset = 0x4, fixed_abs, tag = 'smem constant byte address 0x4 - core index']
  #allocation1 [shape = 'u32[72,128]{1,0:T(1,128)}', space=vmem, size = 0x9000, scoped, tag = 'internal scratch']
  %s0 = inlined_call_operand.vmem [shape: f32[8,32], index: 0, kind: input, shape index: {}]
  %s1 = inlined_call_operand.vmem [shape: s32[8,1], index: 1, kind: input, shape index: {}]
  %s2 = inlined_call_operand.vmem [shape: f32[8,1], index: 2, kind: output, shape index: {}]
  %s3 = sld [smem:[#allocation0]]
  $region18: #{tpu_custom_call.1} parent=0
    _
  %s5 = ssub.s32 1, %s3
  %s6 = scalar_select 0, %s5, %s3
  // Predicated region
  $region2: #{tpu_custom_call.1} parent=0 // pred_check
    _
  $region3: #{tpu_custom_call.1} parent=0 // pred_check_branch
    %8 = sbr.rel (0) target = $region5
  $region4: #{tpu_custom_call.1} parent=0 // pred_region
    _
  $region5: #{tpu_custom_call.1} parent=0 // pred_fallthru
    _
  // Predicated region
  $region6: #{tpu_custom_call.1} parent=0 // pred_check
    _
  $region7: #{tpu_custom_call.1} parent=0 // pred_check_branch
    %10 = sbr.rel (0) target = $region9
  $region8: #{tpu_custom_call.1} parent=0 // pred_region
    _
  $region9: #{tpu_custom_call.1} parent=0 // pred_fallthru
    _
  %v11 = vld [vmem:[%s0] sm:$0xff]
  %v12 = vld [vmem:[%s1] sm:$0xff]
  %vm13 = vcmask 261120
  %v14 = vsel %vm13, %v11, -inf
  %15 = vmax.xlane.f32.xlu0 %v14
  %v16 = vpop.xlane.xlu0 %15
  %v17 = vsub.f32 %v11, %v16
  %v18 = vmul.f32 %v17, 1.442695
  %v19 = vpow.pop %v18
  %v20 = vsel %vm13, %v19, 0.0
  %21 = vadd.xlane.f32.xlu0 %v20
  %v22 = vpop.xlane.xlu0 %21
  %v23 = vlog2.pop %v22
  %v24 = vmul.f32 %v23, 0.6931472
  %v25 = vlaneseq
  %v26 = vand.u32 %v25, 127
  %27 = vset.pattern.permute.xlu0 0
  %28 = vperm.xlu0 %27, %v12
  %v29 = vpop.permute.xlu0 %28
  %vm30 = vcmp.eq.s32.totalorder %v26, %v29
  %v31 = vsel %vm30, 0.903125, 0.003125
  %v32 = vmul.f32 %v31, %v17
  %v33 = vsel %vm13, %v32, 0.0
  %34 = vadd.xlane.f32.xlu0 %v33
  %v35 = vpop.xlane.xlu0 %34
  %v36 = vsub.f32 %v24, %v35
  %v37 = vlaneseq
  %v38 = vshrl.u32 %v37, 7
  %s39 = smul.u32 0, 8
  %v40 = vstv %s39
  %v41 = vadd.s32 %v38, %v40
  %vm42 = vcmp.lt.s32.totalorder %v41, 8
  %v43 = vsel %vm42, %v36, 0.0
  %vm44 = vcmask 7168
  %45 = vst.msk [vmem:[%s2] sm:$0xff] %vm44, %v43
  // Predicated region
  $region10: #{tpu_custom_call.1} parent=0 // pred_check
    _
  $region11: #{tpu_custom_call.1} parent=0 // pred_check_branch
    %47 = sbr.rel (0) target = $region13
  $region12: #{tpu_custom_call.1} parent=0 // pred_region
    _
  $region13: #{tpu_custom_call.1} parent=0 // pred_fallthru
    _
  // Predicated region
  $region14: #{tpu_custom_call.1} parent=0 // pred_check
    _
  $region15: #{tpu_custom_call.1} parent=0 // pred_check_branch
    %49 = sbr.rel (0) target = $region17
  $region16: #{tpu_custom_call.1} parent=0 // pred_region
    _
  $region17: #{tpu_custom_call.1} parent=0 // pred_fallthru
    _

</llo_original>
